<compile_context>
chip_gen: v5e
topology: v5e:2x2
jax: 0.10.0
libtpu: 0.0.40
codegen_flags: <defaults>
</compile_context>

<pallas_src>
import functools

import jax
import jax.numpy as jnp
from jax.experimental import pallas as pl
from jax.experimental.pallas import tpu as pltpu


def _channel_attention_kernel(x_ref, w1_ref, b1_ref, w2_ref, b2_ref, o_ref,
                              sum_acc, max_acc, *, hw_total, hw_tile):
    # x_ref:  (B_TILE, C, HW_TILE) f32     -- current spatial tile
    # w1_ref: (C, Cr)   b1_ref: (1, Cr)
    # w2_ref: (Cr, C)   b2_ref: (1, C)
    # o_ref:  (B_TILE, C) f32
    # sum_acc / max_acc: (B_TILE, C) f32 VMEM scratch accumulators
    k = pl.program_id(1)
    nk = pl.num_programs(1)

    @pl.when(k == 0)
    def _init():
        sum_acc[...] = jnp.zeros_like(sum_acc)
        max_acc[...] = jnp.full_like(max_acc, -jnp.inf)

    x = x_ref[...]  # (B_TILE, C, HW_TILE)

    if hw_total % hw_tile == 0:
        # No padded tail — skip the mask entirely (trace-time decision).
        x_sum = x
        x_max = x
    else:
        lane = jax.lax.broadcasted_iota(jnp.int32, x.shape, dimension=2)
        valid = (k * hw_tile + lane) < hw_total
        x_sum = jnp.where(valid, x, 0.0)
        x_max = jnp.where(valid, x, -jnp.inf)

    # Partial spatial reduction for this tile (lane-axis reduce -> XLU).
    sum_acc[...] += jnp.sum(x_sum, axis=-1)
    max_acc[...] = jnp.maximum(max_acc[...], jnp.max(x_max, axis=-1))

    @pl.when(k == nk - 1)
    def _finalize():
        avg = sum_acc[...] * (1.0 / hw_total)      # (B_TILE, C)
        mx = max_acc[...]                          # (B_TILE, C)

        # Fused shared MLP: one matmul pair on the stacked [avg; max] rows.
        v = jnp.concatenate([avg, mx], axis=0)     # (2*B_TILE, C)
        h = jnp.dot(v, w1_ref[...], preferred_element_type=jnp.float32) + b1_ref[...]
        h = jnp.maximum(h, 0.0)                    # ReLU
        out2 = jnp.dot(h, w2_ref[...], preferred_element_type=jnp.float32) + b2_ref[...]

        bt = sum_acc.shape[0]
        o_ref[...] = jax.nn.sigmoid(out2[:bt] + out2[bt:])


def _pick_hw_tile(hw, b_tile, c, bytes_budget=8 * 1024 * 1024):
    """Lane-dense spatial tile: multiple of 128, <=1024, double-buffer fits budget."""
    if hw <= 128:
        return hw  # full extent is always a legal block
    max_by_budget = max(1, bytes_budget // (2 * b_tile * c * 4))
    tile = min(1024, hw, max_by_budget)
    tile = max(128, (tile // 128) * 128)
    return tile


def channel_attention(x, w1, b1, w2, b2):
    """x: (B, C, H, W) float32. Returns (B, C, 1, 1) sigmoid attention weights.

    w1: (C, Cr), b1: (Cr,), w2: (Cr, C), b2: (C,)  (already transposed for x @ W).
    """
    B, C, H, W = x.shape
    HW = H * W
    Cr = w1.shape[1]
    x_flat = x.reshape(B, C, HW)

    # Batch-block so each block carries the full channel dim for the MLP; on
    # v7x the 'parallel' batch axis shards across the two TensorCores.
    if B > 8 and B % 8 == 0:
        b_tile = 8
    else:
        b_tile = B

    hw_tile = _pick_hw_tile(HW, b_tile, C)
    grid = (pl.cdiv(B, b_tile), pl.cdiv(HW, hw_tile))

    kernel = functools.partial(
        _channel_attention_kernel, hw_total=HW, hw_tile=hw_tile)

    # This kernel is HBM-bandwidth bound: dominant term is the x read.
    cost = pl.CostEstimate(
        flops=2 * B * C * HW + 8 * B * C * Cr,
        transcendentals=2 * B * C,
        bytes_accessed=4 * (B * C * HW + B * C + 2 * C * Cr + Cr + C),
    )

    out = pl.pallas_call(
        kernel,
        out_shape=jax.ShapeDtypeStruct((B, C), jnp.float32),
        grid_spec=pltpu.PrefetchScalarGridSpec(
            num_scalar_prefetch=0,
            grid=grid,
            in_specs=[
                # x: streamed spatial tiles (double-buffered by Pallas).
                pl.BlockSpec((b_tile, C, hw_tile), lambda i, k: (i, 0, k)),
                # Weights/biases: constant block index -> VMEM-resident, no re-DMA.
                pl.BlockSpec((C, Cr), lambda i, k: (0, 0)),
                pl.BlockSpec((1, Cr), lambda i, k: (0, 0)),
                pl.BlockSpec((Cr, C), lambda i, k: (0, 0)),
                pl.BlockSpec((1, C), lambda i, k: (0, 0)),
            ],
            # Output block constant across the spatial axis -> resident accumulator
            # target, written only at finalize.
            out_specs=pl.BlockSpec((b_tile, C), lambda i, k: (i, 0)),
            scratch_shapes=[
                pltpu.VMEM((b_tile, C), jnp.float32),  # running sum
                pltpu.VMEM((b_tile, C), jnp.float32),  # running max
            ],
        ),
        compiler_params=pltpu.CompilerParams(
            dimension_semantics=("parallel", "arbitrary"),
        ),
        cost_estimate=cost,
    )(x_flat, w1, b1.reshape(1, Cr), w2, b2.reshape(1, C))

    return out.reshape(B, C, 1, 1)

    # TODO(synk): if the surrounding model can supply bf16/NHWC activations,
    # accept them directly to halve the dominant HBM read (cast to f32 in-kernel
    # before the mean on v5e).


def _reference(x, w1, b1, w2, b2):
    B, C, H, W = x.shape
    avg = jnp.mean(x, axis=(2, 3))
    mx = jnp.max(x, axis=(2, 3))

    def mlp(v):
        return jnp.maximum(v @ w1 + b1, 0.0) @ w2 + b2

    return jax.nn.sigmoid(mlp(avg) + mlp(mx)).reshape(B, C, 1, 1)


if __name__ == "__main__":
    # Small shapes consistent with the module: in_channels divisible by
    # reduction_ratio=16.  H=W=20 gives HW=400, which exercises both the
    # multi-tile spatial accumulation and the masked ragged tail (400 = 384+16).
    B, C, H, W = 2, 64, 20, 20
    reduction_ratio = 16
    Cr = C // reduction_ratio  # 4

    key = jax.random.PRNGKey(0)
    kx, k1, k2, k3, k4 = jax.random.split(key, 5)

    x = jax.random.normal(kx, (B, C, H, W), dtype=jnp.float32)
    # PyTorch Linear weight is (out, in); here we directly build the transposed
    # (in, out) matrices used for x @ W.
    w1 = jax.random.normal(k1, (C, Cr), dtype=jnp.float32) * 0.1   # Linear(C, C//r)
    b1 = jax.random.normal(k2, (Cr,), dtype=jnp.float32) * 0.1
    w2 = jax.random.normal(k3, (Cr, C), dtype=jnp.float32) * 0.1   # Linear(C//r, C)
    b2 = jax.random.normal(k4, (C,), dtype=jnp.float32) * 0.1

    out = channel_attention(x, w1, b1, w2, b2)
    out = jax.block_until_ready(out)

    ref = _reference(x, w1, b1, w2, b2)
    assert out.shape == (B, C, 1, 1)
    assert jnp.allclose(out, ref, atol=1e-5, rtol=1e-5), (
        float(jnp.max(jnp.abs(out - ref))))

    print("KERNEL_OK")
</pallas_src>

<mosaic_0001>
module attributes {stable_mosaic.version = 11 : i64} {
  func.func @_channel_attention_kernel(%arg0: i32, %arg1: i32, %arg2: memref<2x64x384xf32, #tpu.memory_space<vmem>>, %arg3: memref<64x4xf32, #tpu.memory_space<vmem>>, %arg4: memref<1x4xf32, #tpu.memory_space<vmem>>, %arg5: memref<4x64xf32, #tpu.memory_space<vmem>>, %arg6: memref<1x64xf32, #tpu.memory_space<vmem>>, %arg7: memref<2x64xf32, #tpu.memory_space<vmem>>, %arg8: memref<2x64xf32, #tpu.memory_space<vmem>>, %arg9: memref<2x64xf32, #tpu.memory_space<vmem>>) attributes {dimension_semantics = [#tpu.dimension_semantics<parallel>, #tpu.dimension_semantics<arbitrary>], iteration_bounds = array<i64: 1, 2>, scalar_prefetch = 0 : i64, scratch_operands = 2 : i64, tpu.core_type = #tpu.core_type<tc>, window_params = [{transform_indices = @transform_0, window_bounds = array<i64: 2, 64, 384>}, {pipeline_mode = #tpu.pipeline_mode<synchronous>, transform_indices = @transform_1, window_bounds = array<i64: 64, 4>}, {pipeline_mode = #tpu.pipeline_mode<synchronous>, transform_indices = @transform_2, window_bounds = array<i64: 1, 4>}, {pipeline_mode = #tpu.pipeline_mode<synchronous>, transform_indices = @transform_3, window_bounds = array<i64: 4, 64>}, {pipeline_mode = #tpu.pipeline_mode<synchronous>, transform_indices = @transform_4, window_bounds = array<i64: 1, 64>}, {transform_indices = @transform_5, window_bounds = array<i64: 2, 64>}]} {
    %c0_i32 = arith.constant 0 : i32
    %0 = arith.cmpi eq, %arg1, %c0_i32 : i32
    %1 = arith.extui %0 : i1 to i32
    %c0_i32_0 = arith.constant 0 : i32
    %2 = arith.cmpi ne, %1, %c0_i32_0 : i32
    scf.if %2 {
      %cst_15 = arith.constant 0.000000e+00 : f32
      %25 = vector.broadcast %cst_15 : f32 to vector<2x64xf32>
      %c0_16 = arith.constant 0 : index
      %c0_17 = arith.constant 0 : index
      %26 = vector.load %arg8[%c0_16, %c0_17] : memref<2x64xf32, #tpu.memory_space<vmem>>, vector<2x64xf32>
      tpu.vector_store %arg8[%c0_16, %c0_17], %25 {strides = array<i32>} : memref<2x64xf32, #tpu.memory_space<vmem>>, vector<2x64xf32>,
      %cst_18 = arith.constant 0xFF800000 : f32
      %27 = vector.broadcast %cst_18 : f32 to vector<2x64xf32>
      %c0_19 = arith.constant 0 : index
      %c0_20 = arith.constant 0 : index
      %28 = vector.load %arg9[%c0_19, %c0_20] : memref<2x64xf32, #tpu.memory_space<vmem>>, vector<2x64xf32>
      tpu.vector_store %arg9[%c0_19, %c0_20], %27 {strides = array<i32>} : memref<2x64xf32, #tpu.memory_space<vmem>>, vector<2x64xf32>,
    } else {
    }
    %c0 = arith.constant 0 : index
    %c0_1 = arith.constant 0 : index
    %c0_2 = arith.constant 0 : index
    %3 = vector.load %arg2[%c0, %c0_1, %c0_2] : memref<2x64x384xf32, #tpu.memory_space<vmem>>, vector<2x64x384xf32>
    %4 = tpu.iota {dimensions = array<i32: 2>} : vector<2x64x384xi32>
    %c384_i32 = arith.constant 384 : i32
    %5 = arith.muli %arg1, %c384_i32 : i32
    %6 = vector.broadcast %5 : i32 to vector<2x64x384xi32>
    %7 = arith.addi %6, %4 : vector<2x64x384xi32>
    %c400_i32 = arith.constant 400 : i32
    %8 = vector.broadcast %c400_i32 : i32 to vector<2x64x384xi32>
    %9 = arith.cmpi slt, %7, %8 : vector<2x64x384xi32>
    %cst = arith.constant 0.000000e+00 : f32
    %10 = vector.broadcast %cst : f32 to vector<2x64x384xf32>
    %11 = arith.select %9, %3, %10 : vector<2x64x384xi1>, vector<2x64x384xf32>
    %cst_3 = arith.constant 0xFF800000 : f32
    %12 = vector.broadcast %cst_3 : f32 to vector<2x64x384xf32>
    %13 = arith.select %9, %3, %12 : vector<2x64x384xi1>, vector<2x64x384xf32>
    %c0_4 = arith.constant 0 : index
    %c0_5 = arith.constant 0 : index
    %14 = vector.load %arg8[%c0_4, %c0_5] : memref<2x64xf32, #tpu.memory_space<vmem>>, vector<2x64xf32>
    %cst_6 = arith.constant dense<0.000000e+00> : vector<2x64xf32>
    %15 = vector.multi_reduction <add>, %11, %cst_6 [2] : vector<2x64x384xf32> to vector<2x64xf32>
    %16 = arith.addf %14, %15 : vector<2x64xf32>
    %c0_7 = arith.constant 0 : index
    %c0_8 = arith.constant 0 : index
    %17 = vector.load %arg8[%c0_7, %c0_8] : memref<2x64xf32, #tpu.memory_space<vmem>>, vector<2x64xf32>
    tpu.vector_store %arg8[%c0_7, %c0_8], %16 {strides = array<i32>} : memref<2x64xf32, #tpu.memory_space<vmem>>, vector<2x64xf32>,
    %c0_9 = arith.constant 0 : index
    %c0_10 = arith.constant 0 : index
    %18 = vector.load %arg9[%c0_9, %c0_10] : memref<2x64xf32, #tpu.memory_space<vmem>>, vector<2x64xf32>
    %cst_11 = arith.constant dense<0xFF800000> : vector<2x64xf32>
    %19 = vector.multi_reduction <maximumf>, %13, %cst_11 [2] : vector<2x64x384xf32> to vector<2x64xf32>
    %20 = arith.maximumf %18, %19 : vector<2x64xf32>
    %c0_12 = arith.constant 0 : index
    %c0_13 = arith.constant 0 : index
    %21 = vector.load %arg9[%c0_12, %c0_13] : memref<2x64xf32, #tpu.memory_space<vmem>>, vector<2x64xf32>
    tpu.vector_store %arg9[%c0_12, %c0_13], %20 {strides = array<i32>} : memref<2x64xf32, #tpu.memory_space<vmem>>, vector<2x64xf32>,
    %c1_i32 = arith.constant 1 : i32
    %22 = arith.cmpi eq, %arg1, %c1_i32 : i32
    %23 = arith.extui %22 : i1 to i32
    %c0_i32_14 = arith.constant 0 : i32
    %24 = arith.cmpi ne, %23, %c0_i32_14 : i32
    scf.if %24 {
      %c0_15 = arith.constant 0 : index
      %c0_16 = arith.constant 0 : index
      %25 = vector.load %arg8[%c0_15, %c0_16] : memref<2x64xf32, #tpu.memory_space<vmem>>, vector<2x64xf32>
      %cst_17 = arith.constant 2.500000e-03 : f32
      %26 = vector.broadcast %cst_17 : f32 to vector<2x64xf32>
      %27 = arith.mulf %25, %26 : vector<2x64xf32>
      %c0_18 = arith.constant 0 : index
      %c0_19 = arith.constant 0 : index
      %28 = vector.load %arg9[%c0_18, %c0_19] : memref<2x64xf32, #tpu.memory_space<vmem>>, vector<2x64xf32>
      %29 = tpu.concatenate %27, %28 in 0 : vector<2x64xf32>, vector<2x64xf32> -> vector<4x64xf32>
      %c0_20 = arith.constant 0 : index
      %c0_21 = arith.constant 0 : index
      %30 = vector.load %arg3[%c0_20, %c0_21] : memref<64x4xf32, #tpu.memory_space<vmem>>, vector<64x4xf32>
      %cst_22 = arith.constant dense<0.000000e+00> : vector<4x4xf32>
      %31 = tpu.matmul %29, %30, %cst_22 {dimension_numbers = #tpu.dot_dimension_numbers<[1], [0], [0], [1], [0, 0, 1, 1], [], []>} : vector<4x64xf32>, vector<64x4xf32>, vector<4x4xf32> -> vector<4x4xf32>
      %c0_23 = arith.constant 0 : index
      %c0_24 = arith.constant 0 : index
      %32 = vector.load %arg4[%c0_23, %c0_24] : memref<1x4xf32, #tpu.memory_space<vmem>>, vector<1x4xf32>
      %33 = vector.broadcast %32 : vector<1x4xf32> to vector<4x4xf32>
      %34 = arith.addf %31, %33 : vector<4x4xf32>
      %cst_25 = arith.constant 0.000000e+00 : f32
      %35 = vector.broadcast %cst_25 : f32 to vector<4x4xf32>
      %36 = arith.maximumf %34, %35 : vector<4x4xf32>
      %c0_26 = arith.constant 0 : index
      %c0_27 = arith.constant 0 : index
      %37 = vector.load %arg5[%c0_26, %c0_27] : memref<4x64xf32, #tpu.memory_space<vmem>>, vector<4x64xf32>
      %cst_28 = arith.constant dense<0.000000e+00> : vector<4x64xf32>
      %38 = tpu.matmul %36, %37, %cst_28 {dimension_numbers = #tpu.dot_dimension_numbers<[1], [0], [0], [1], [0, 0, 1, 1], [], []>} : vector<4x4xf32>, vector<4x64xf32>, vector<4x64xf32> -> vector<4x64xf32>
      %c0_29 = arith.constant 0 : index
      %c0_30 = arith.constant 0 : index
      %39 = vector.load %arg6[%c0_29, %c0_30] : memref<1x64xf32, #tpu.memory_space<vmem>>, vector<1x64xf32>
      %40 = vector.broadcast %39 : vector<1x64xf32> to vector<4x64xf32>
      %41 = arith.addf %38, %40 : vector<4x64xf32>
      %42 = vector.extract_strided_slice %41 {offsets = [0, 0], sizes = [2, 64], strides = [1, 1]} : vector<4x64xf32> to vector<2x64xf32>
      %43 = vector.extract_strided_slice %41 {offsets = [2, 0], sizes = [2, 64], strides = [1, 1]} : vector<4x64xf32> to vector<2x64xf32>
      %44 = arith.addf %42, %43 : vector<2x64xf32>
      %45 = arith.negf %44 : vector<2x64xf32>
      %46 = math.exp %45 : vector<2x64xf32>
      %cst_31 = arith.constant 1.000000e+00 : f32
      %47 = vector.broadcast %cst_31 : f32 to vector<2x64xf32>
      %48 = arith.addf %47, %46 : vector<2x64xf32>
      %49 = arith.divf %47, %48 : vector<2x64xf32>
      %c0_32 = arith.constant 0 : index
      %c0_33 = arith.constant 0 : index
      %50 = vector.load %arg7[%c0_32, %c0_33] : memref<2x64xf32, #tpu.memory_space<vmem>>, vector<2x64xf32>
      tpu.vector_store %arg7[%c0_32, %c0_33], %49 {strides = array<i32>} : memref<2x64xf32, #tpu.memory_space<vmem>>, vector<2x64xf32>,
    } else {
    }
    return
  }
  func.func @transform_0(%arg0: i32, %arg1: i32) -> (i32, i32, i32) {
    %c0_i32 = arith.constant 0 : i32
    %c0_i32_0 = arith.constant 0 : i32
    return %arg0, %c0_i32, %arg1 : i32, i32, i32
  }
  func.func @transform_1(%arg0: i32, %arg1: i32) -> (i32, i32) {
    %c0_i32 = arith.constant 0 : i32
    %c0_i32_0 = arith.constant 0 : i32
    %c0_i32_1 = arith.constant 0 : i32
    return %c0_i32, %c0_i32_0 : i32, i32
  }
  func.func @transform_2(%arg0: i32, %arg1: i32) -> (i32, i32) {
    %c0_i32 = arith.constant 0 : i32
    %c0_i32_0 = arith.constant 0 : i32
    %c0_i32_1 = arith.constant 0 : i32
    return %c0_i32, %c0_i32_0 : i32, i32
  }
  func.func @transform_3(%arg0: i32, %arg1: i32) -> (i32, i32) {
    %c0_i32 = arith.constant 0 : i32
    %c0_i32_0 = arith.constant 0 : i32
    %c0_i32_1 = arith.constant 0 : i32
    return %c0_i32, %c0_i32_0 : i32, i32
  }
  func.func @transform_4(%arg0: i32, %arg1: i32) -> (i32, i32) {
    %c0_i32 = arith.constant 0 : i32
    %c0_i32_0 = arith.constant 0 : i32
    %c0_i32_1 = arith.constant 0 : i32
    return %c0_i32, %c0_i32_0 : i32, i32
  }
  func.func @transform_5(%arg0: i32, %arg1: i32) -> (i32, i32) {
    %c0_i32 = arith.constant 0 : i32
    %c0_i32_0 = arith.constant 0 : i32
    return %arg0, %c0_i32 : i32, i32
  }
}

</mosaic_0001>

<llo_original>
// kernel: tpu_custom_call.1
$region0: #{tpu_custom_call.1}
  #allocation0 [shape = 'u32[]', space=smem, size = 0x4, offset = 0x4, fixed_abs, tag = 'smem constant byte address 0x4 - core index']
  #allocation1 [shape = 'u32[72,128]{1,0:T(1,128)}', space=vmem, size = 0x9000, scoped, tag = 'internal scratch']
  #allocation2 [shape = 'f32[2,64]{1,0:T(2,128)}', space=vmem, size = 0x400, scoped, tag = 'scratch operand']
  #allocation3 [shape = 'f32[2,64]{1,0:T(2,128)}', space=vmem, size = 0x400, scoped, tag = 'scratch operand']
  %s0 = inlined_call_operand.hbm [shape: f32[2,64,400], index: 0, kind: input, shape index: {}]
  %s1 = inlined_call_operand.vmem [shape: f32[64,4], index: 1, kind: input, shape index: {}]
  %s2 = inlined_call_operand.vmem [shape: f32[1,4], index: 2, kind: input, shape index: {}]
  %s3 = inlined_call_operand.vmem [shape: f32[4,64], index: 3, kind: input, shape index: {}]
  %s4 = inlined_call_operand.vmem [shape: f32[1,64], index: 4, kind: input, shape index: {}]
  %s5 = inlined_call_operand.hbm [shape: f32[2,64], index: 5, kind: output, shape index: {}]
  %s6 = sld [smem:[#allocation0]]
  $region65: #{tpu_custom_call.1} parent=0
    _
  %s8 = ssub.s32 1, %s6
  %s9 = scalar_select 0, %s8, %s6
  $region1: #{tpu_custom_call.1} parent=0
    #allocation4 [shape = 'u8[393216]{0}', space=vmem, size = 0x60000, scoped, tag = 'input window, operand 0']
    #allocation5 [shape = 's32[2]{0}', space=sflag, size = 0x8, scoped, tag = 'scoped memory for tpu_custom_call.1']
    #allocation6 [shape = 's32[2]{0}', space=sflag, size = 0x8, scoped, tag = 'scoped memory for tpu_custom_call.1']
    #allocation7 [shape = 'u8[1024]{0}', space=vmem, size = 0x400, scoped, tag = 'output window, operand 0, single buffered']
    %10 = vsyncpa [#allocation5], 0
    %s11 = scalar_lea.sflag [#allocation5], 1
    %12 = vsyncpa %s11, 0
    %13 = vsyncpa [#allocation6], 0
    loop: start=0, step=1, limit=4
    $region2: #{tpu_custom_call.1} parent=1 // loop_pre_header
      _
    $region3: #{tpu_custom_call.1} parent=1 // loop_header
      %s15 = sphi 0, %s19
      %p16 = scmp.ge.s32.totalorder %s15, 4
      %s22 = sphi 0, %s34
      %s23 = sphi 0, %s30
      %s24 = sphi 0, %s22
      %s25 = sphi 0, %s23
      %s26 = sphi 0, %s24
      %s27 = sphi 0, %s25
      %s39 = sphi 0, %s41
      %s42 = sphi 0, %s39
      %s43 = sphi 0, %s42
      %s59 = sphi 0, %s43
      %s63 = sphi 0, %s63
      %s65 = sphi 0, %s63
      %s66 = sphi 0, %s65
      %s80 = sphi 0, %s66
      %s84 = sphi 0, %s84
      %s86 = sphi 0, %s84
      %s87 = sphi 0, %s86
      %s101 = sphi 0, %s87
      %s105 = sphi 0, %s105
      %s107 = sphi 0, %s105
      %s108 = sphi 0, %s107
      %s122 = sphi 0, %s108
      %s126 = sphi 0, %s126
      %s128 = sphi 0, %s126
      %s129 = sphi 0, %s128
      %s143 = sphi 0, %s129
      %s149 = sphi 0, %s151
      %s152 = sphi 0, %s149
      %s153 = sphi 0, %s152
      %s169 = sphi 0, %s153
    $region4: #{tpu_custom_call.1} parent=1 // loop_header_branch
      %18 = sbr.rel (%p16) target = $region8
    $region5: #{tpu_custom_call.1} parent=1 // loop_body
      %s20 = ssub.s32 %s15, 1
      %s21 = ssub.s32 %s15, 2
      %s28 = sadd.s32 1, %s23
      %p29 = scmp.ge.s32.totalorder %s28, 2
      %s30 = scalar_select %p29, 0, %s28
      %s31 = sadd.s32 1, %s22
      %s32 = scalar_select %p29, %s31, %s22
      %p33 = scmp.ge.s32.totalorder %s32, 1
      %s34 = scalar_select %p33, 0, %s32
      %s35 = ssub.s32 %s22, %s34
      %s36 = ssub.s32 %s23, %s30
      %s37 = sor.u32 %s35, %s36
      %p38 = scmp.eq.s32.totalorder %s37, 0
      %s40 = sadd.s32 %s39, 1
      %s41 = scalar_select %p38, %s39, %s40
      %p44 = pneg %p38
      %p45 = scmp.eq.s32.totalorder %s15, 1
      %p46 = por %p44, %p45
      %p47 = scmp.ne.s32.totalorder %s39, %s42
      %p48 = scmp.eq.s32.totalorder %s15, 0
      %p49 = por %p47, %p48
      %p50 = scmp.ne.s32.totalorder %s39, %s42
      %p51 = scmp.eq.s32.totalorder %s20, 1
      %p52 = por %p50, %p51
      %p53 = scmp.ne.s32.totalorder %s42, %s43
      %p54 = scmp.eq.s32.totalorder %s20, 0
      %p55 = por %p53, %p54
      %p56 = scmp.ne.s32.totalorder %s42, %s43
      %p57 = scmp.eq.s32.totalorder %s21, 1
      %p58 = por %p56, %p57
      %p60 = scmp.ne.s32.totalorder %s43, %s59
      %p61 = scmp.eq.s32.totalorder %s21, 0
      %p62 = por %p60, %p61
      %s64 = sadd.s32 %s63, 1
      %p67 = scmp.eq.s32.totalorder %s15, 1
      %p68 = scmp.ne.s32.totalorder %s63, %s65
      %p69 = scmp.eq.s32.totalorder %s15, 0
      %p70 = por %p68, %p69
      %p71 = scmp.ne.s32.totalorder %s63, %s65
      %p72 = scmp.eq.s32.totalorder %s20, 1
      %p73 = por %p71, %p72
      %p74 = scmp.ne.s32.totalorder %s65, %s66
      %p75 = scmp.eq.s32.totalorder %s20, 0
      %p76 = por %p74, %p75
      %p77 = scmp.ne.s32.totalorder %s65, %s66
      %p78 = scmp.eq.s32.totalorder %s21, 1
      %p79 = por %p77, %p78
      %p81 = scmp.ne.s32.totalorder %s66, %s80
      %p82 = scmp.eq.s32.totalorder %s21, 0
      %p83 = por %p81, %p82
      %s85 = sadd.s32 %s84, 1
      %p88 = scmp.eq.s32.totalorder %s15, 1
      %p89 = scmp.ne.s32.totalorder %s84, %s86
      %p90 = scmp.eq.s32.totalorder %s15, 0
      %p91 = por %p89, %p90
      %p92 = scmp.ne.s32.totalorder %s84, %s86
      %p93 = scmp.eq.s32.totalorder %s20, 1
      %p94 = por %p92, %p93
      %p95 = scmp.ne.s32.totalorder %s86, %s87
      %p96 = scmp.eq.s32.totalorder %s20, 0
      %p97 = por %p95, %p96
      %p98 = scmp.ne.s32.totalorder %s86, %s87
      %p99 = scmp.eq.s32.totalorder %s21, 1
      %p100 = por %p98, %p99
      %p102 = scmp.ne.s32.totalorder %s87, %s101
      %p103 = scmp.eq.s32.totalorder %s21, 0
      %p104 = por %p102, %p103
      %s106 = sadd.s32 %s105, 1
      %p109 = scmp.eq.s32.totalorder %s15, 1
      %p110 = scmp.ne.s32.totalorder %s105, %s107
      %p111 = scmp.eq.s32.totalorder %s15, 0
      %p112 = por %p110, %p111
      %p113 = scmp.ne.s32.totalorder %s105, %s107
      %p114 = scmp.eq.s32.totalorder %s20, 1
      %p115 = por %p113, %p114
      %p116 = scmp.ne.s32.totalorder %s107, %s108
      %p117 = scmp.eq.s32.totalorder %s20, 0
      %p118 = por %p116, %p117
      %p119 = scmp.ne.s32.totalorder %s107, %s108
      %p120 = scmp.eq.s32.totalorder %s21, 1
      %p121 = por %p119, %p120
      %p123 = scmp.ne.s32.totalorder %s108, %s122
      %p124 = scmp.eq.s32.totalorder %s21, 0
      %p125 = por %p123, %p124
      %s127 = sadd.s32 %s126, 1
      %p130 = scmp.eq.s32.totalorder %s15, 1
      %p131 = scmp.ne.s32.totalorder %s126, %s128
      %p132 = scmp.eq.s32.totalorder %s15, 0
      %p133 = por %p131, %p132
      %p134 = scmp.ne.s32.totalorder %s126, %s128
      %p135 = scmp.eq.s32.totalorder %s20, 1
      %p136 = por %p134, %p135
      %p137 = scmp.ne.s32.totalorder %s128, %s129
      %p138 = scmp.eq.s32.totalorder %s20, 0
      %p139 = por %p137, %p138
      %p140 = scmp.ne.s32.totalorder %s128, %s129
      %p141 = scmp.eq.s32.totalorder %s21, 1
      %p142 = por %p140, %p141
      %p144 = scmp.ne.s32.totalorder %s129, %s143
      %p145 = scmp.eq.s32.totalorder %s21, 0
      %p146 = por %p144, %p145
      %s147 = ssub.s32 %s22, %s34
      %p148 = scmp.eq.s32.totalorder %s147, 0
      %s150 = sadd.s32 %s149, 1
      %s151 = scalar_select %p148, %s149, %s150
      %p154 = pneg %p148
      %p155 = scmp.eq.s32.totalorder %s15, 1
      %p156 = por %p154, %p155
      %p157 = scmp.ne.s32.totalorder %s149, %s152
      %p158 = scmp.eq.s32.totalorder %s15, 0
      %p159 = por %p157, %p158
      %p160 = scmp.ne.s32.totalorder %s149, %s152
      %p161 = scmp.eq.s32.totalorder %s20, 1
      %p162 = por %p160, %p161
      %p163 = scmp.ne.s32.totalorder %s152, %s153
      %p164 = scmp.eq.s32.totalorder %s20, 0
      %p165 = por %p163, %p164
      %p166 = scmp.ne.s32.totalorder %s152, %s153
      %p167 = scmp.eq.s32.totalorder %s21, 1
      %p168 = por %p166, %p167
      %p170 = scmp.ne.s32.totalorder %s153, %s169
      %p171 = scmp.eq.s32.totalorder %s21, 0
      %p172 = por %p170, %p171
      %p173 = scmp.le.s32.totalorder 1, %s15
      %p174 = scmp.lt.s32.totalorder %s15, 3
      %p175 = pnand %p173, %p174
      %p176 = pneg %p175
      // Predicated region
      $region9: #{tpu_custom_call.1} parent=5 // pred_check
        _
      $region10: #{tpu_custom_call.1} parent=5 // pred_check_branch
        %178 = sbr.rel (%p175) target = $region12
      $region11: #{tpu_custom_call.1} parent=5 // pred_region
        %s179 = ssub.s32 %s15, 1
        // Predicated region
        $region13: #{tpu_custom_call.1} parent=11 // pred_check
          %p180 = pneg %p76
        $region14: #{tpu_custom_call.1} parent=11 // pred_check_branch
          %182 = sbr.rel (%p180) target = $region16
        $region15: #{tpu_custom_call.1} parent=11 // pred_region
          _
        $region16: #{tpu_custom_call.1} parent=11 // pred_fallthru
          _
        // Predicated region
        $region17: #{tpu_custom_call.1} parent=11 // pred_check
          %p183 = pneg %p97
        $region18: #{tpu_custom_call.1} parent=11 // pred_check_branch
          %185 = sbr.rel (%p183) target = $region20
        $region19: #{tpu_custom_call.1} parent=11 // pred_region
          _
        $region20: #{tpu_custom_call.1} parent=11 // pred_fallthru
          _
        // Predicated region
        $region21: #{tpu_custom_call.1} parent=11 // pred_check
          %p186 = pneg %p118
        $region22: #{tpu_custom_call.1} parent=11 // pred_check_branch
          %188 = sbr.rel (%p186) target = $region24
        $region23: #{tpu_custom_call.1} parent=11 // pred_region
          _
        $region24: #{tpu_custom_call.1} parent=11 // pred_fallthru
          _
        // Predicated region
        $region25: #{tpu_custom_call.1} parent=11 // pred_check
          %p189 = pneg %p139
        $region26: #{tpu_custom_call.1} parent=11 // pred_check_branch
          %191 = sbr.rel (%p189) target = $region28
        $region27: #{tpu_custom_call.1} parent=11 // pred_region
          _
        $region28: #{tpu_custom_call.1} parent=11 // pred_fallthru
          _
      $region12: #{tpu_custom_call.1} parent=5 // pred_fallthru
        _
      %p192 = scmp.lt.s32.totalorder %s15, 2
      // Predicated region
      $region29: #{tpu_custom_call.1} parent=5 // pred_check
        %p193 = pneg %p192
      $region30: #{tpu_custom_call.1} parent=5 // pred_check_branch
        %195 = sbr.rel (%p193) target = $region32
      $region31: #{tpu_custom_call.1} parent=5 // pred_region
        // Predicated region
        $region33: #{tpu_custom_call.1} parent=31 // pred_check
          %p196 = pneg %p49
        $region34: #{tpu_custom_call.1} parent=31 // pred_check_branch
          %198 = sbr.rel (%p196) target = $region36
        $region35: #{tpu_custom_call.1} parent=31 // pred_region
          %s199 = sand.u32 %s39, 1
          %s200 = scalar_lea.sflag [#allocation5], %s199
          %s201 = sand.u32 %s39, 1
          %s202 = smul.addr %s201, 384
          %s203 = scalar_lea.vmem [#allocation4], %s202
          %s204 = smul.u32 2, %s22
          %s205 = smul.u32 3, %s23
          %s206 = ssub.s32 4, %s205
          %p207 = scmp.lt.s32.totalorder %s206, 3
          %s208 = scalar_select %p207, %s206, 3
          %s209 = smul.u32 128, %s208
          %s210 = ssub.s32 384, %s209
          %s211 = sshll.u32 %s210, 4
          %212 = vsyncadd %s200, %s211
          %p213 = scmp.ne.s32.totalorder 0, %s209
          %s214 = smul.addr %s204, 32
          %s215 = sadd.s32 %s205, %s214
          %s216 = smul.addr %s215, 8
          %s217 = scalar_lea.hbm %s0, %s216
          %s218 = smul.u32 %s208, 8
          %s219 = smul.u32 %s218, 16
          %s220 = sshll.u32 %s217, 4
          %s221 = int_to_ptr.hbm [resolvable:$true] %s220
          %s222 = sshll.u32 %s203, 4
          %s223 = int_to_ptr.vmem [resolvable:$true] %s222
          %s224 = sshll.u32 %s219, 4
          %228 = dma.hbm_to_vmem [thread:$0]  (%p213), %s221, %s224, %s223, %s200, 512, 384, %s218
        $region36: #{tpu_custom_call.1} parent=31 // pred_fallthru
          _
      $region32: #{tpu_custom_call.1} parent=5 // pred_fallthru
        _
      %p229 = scmp.le.s32.totalorder 1, %s15
      %p230 = scmp.lt.s32.totalorder %s15, 3
      %p231 = pnand %p229, %p230
      %p232 = pneg %p231
      // Predicated region
      $region37: #{tpu_custom_call.1} parent=5 // pred_check
        _
      $region38: #{tpu_custom_call.1} parent=5 // pred_check_branch
        %234 = sbr.rel (%p231) target = $region40
      $region39: #{tpu_custom_call.1} parent=5 // pred_region
        %s235 = ssub.s32 %s15, 1
        %s236 = sand.u32 %s42, 1
        %s237 = scalar_lea.sflag [#allocation5], %s236
        %s238 = sand.u32 %s42, 1
        %s239 = smul.addr %s238, 384
        %s240 = scalar_lea.vmem [#allocation4], %s239
        // Predicated region
        $region41: #{tpu_custom_call.1} parent=39 // pred_check
          %p241 = pneg %p55
        $region42: #{tpu_custom_call.1} parent=39 // pred_check_branch
          %243 = sbr.rel (%p241) target = $region44
        $region43: #{tpu_custom_call.1} parent=39 // pred_region
          %245 = dma.done %s237, 6144
        $region44: #{tpu_custom_call.1} parent=39 // pred_fallthru
          _
        %s246 = sand.u32 %s42, 1
        %s247 = scalar_lea.sflag [#allocation5], %s246
        %s248 = sand.u32 %s42, 1
        %s249 = smul.addr %s248, 384
        %s250 = scalar_lea.vmem [#allocation4], %s249
        %p251 = pneg %p55
        %p252 = pneg %p52
        %p253 = pneg %p76
        %p254 = pneg %p73
        %p255 = pneg %p97
        %p256 = pneg %p94
        %p257 = pneg %p118
        %p258 = pneg %p115
        %p259 = pneg %p139
        %p260 = pneg %p136
        %p261 = pneg %p165
        %p262 = pneg %p162
        %s263 = smul.u32 2, %s24
        %s264 = smul.u32 3, %s25
        %s265 = ssub.s32 4, %s264
        %p266 = scmp.lt.s32.totalorder %s265, 3
        %s267 = scalar_select %p266, %s265, 3
        %s268 = smul.u32 128, %s267
        %p269 = scmp.eq.s32.totalorder %s25, 0
        // Predicated region
        $region45: #{tpu_custom_call.1} parent=39 // pred_check
          %p270 = pneg %p269
        $region46: #{tpu_custom_call.1} parent=39 // pred_check_branch
          %272 = sbr.rel (%p270) target = $region48
        $region47: #{tpu_custom_call.1} parent=39 // pred_region
          %vm273 = vcmask 517120
          %274 = vst.msk [vmem:[#allocation2] sm:$0x3] %vm273, 0.0
          %275 = vst.msk [vmem:[#allocation3] sm:$0x3] %vm273, -inf
        $region48: #{tpu_custom_call.1} parent=39 // pred_fallthru
          _
        %v276 = vld [vmem:[%s240] sm:$0xff]
        %v277 = vld [vmem:[%s240 + $0x8] sm:$0xff]
        %v278 = vld [vmem:[%s240 + $0x10] sm:$0xff]
        %v279 = vld [vmem:[%s240 + $0x18] sm:$0xff]
        %v280 = vld [vmem:[%s240 + $0x20] sm:$0xff]
        %v281 = vld [vmem:[%s240 + $0x28] sm:$0xff]
        %v282 = vld [vmem:[%s240 + $0x30] sm:$0xff]
        %v283 = vld [vmem:[%s240 + $0x38] sm:$0xff]
        %v284 = vld [vmem:[%s240 + $0x40] sm:$0xff]
        %v285 = vld [vmem:[%s240 + $0x48] sm:$0xff]
        %v286 = vld [vmem:[%s240 + $0x50] sm:$0xff]
        %v287 = vld [vmem:[%s240 + $0x58] sm:$0xff]
        %v288 = vld [vmem:[%s240 + $0x60] sm:$0xff]
        %v289 = vld [vmem:[%s240 + $0x68] sm:$0xff]
        %v290 = vld [vmem:[%s240 + $0x70] sm:$0xff]
        %v291 = vld [vmem:[%s240 + $0x78] sm:$0xff]
        %v292 = vld [vmem:[%s240 + $0x80] sm:$0xff]
        %v293 = vld [vmem:[%s240 + $0x88] sm:$0xff]
        %v294 = vld [vmem:[%s240 + $0x90] sm:$0xff]
        %v295 = vld [vmem:[%s240 + $0x98] sm:$0xff]
        %v296 = vld [vmem:[%s240 + $0xa0] sm:$0xff]
        %v297 = vld [vmem:[%s240 + $0xa8] sm:$0xff]
        %v298 = vld [vmem:[%s240 + $0xb0] sm:$0xff]
        %v299 = vld [vmem:[%s240 + $0xb8] sm:$0xff]
        %v300 = vld [vmem:[%s240 + $0xc0] sm:$0xff]
        %v301 = vld [vmem:[%s240 + $0xc8] sm:$0xff]
        %v302 = vld [vmem:[%s240 + $0xd0] sm:$0xff]
        %v303 = vld [vmem:[%s240 + $0xd8] sm:$0xff]
        %v304 = vld [vmem:[%s240 + $0xe0] sm:$0xff]
        %v305 = vld [vmem:[%s240 + $0xe8] sm:$0xff]
        %v306 = vld [vmem:[%s240 + $0xf0] sm:$0xff]
        %v307 = vld [vmem:[%s240 + $0xf8] sm:$0xff]
        %v308 = vld [vmem:[%s240 + $0x100] sm:$0xff]
        %v309 = vld [vmem:[%s240 + $0x108] sm:$0xff]
        %v310 = vld [vmem:[%s240 + $0x110] sm:$0xff]
        %v311 = vld [vmem:[%s240 + $0x118] sm:$0xff]
        %v312 = vld [vmem:[%s240 + $0x120] sm:$0xff]
        %v313 = vld [vmem:[%s240 + $0x128] sm:$0xff]
        %v314 = vld [vmem:[%s240 + $0x130] sm:$0xff]
        %v315 = vld [vmem:[%s240 + $0x138] sm:$0xff]
        %v316 = vld [vmem:[%s240 + $0x140] sm:$0xff]
        %v317 = vld [vmem:[%s240 + $0x148] sm:$0xff]
        %v318 = vld [vmem:[%s240 + $0x150] sm:$0xff]
        %v319 = vld [vmem:[%s240 + $0x158] sm:$0xff]
        %v320 = vld [vmem:[%s240 + $0x160] sm:$0xff]
        %v321 = vld [vmem:[%s240 + $0x168] sm:$0xff]
        %v322 = vld [vmem:[%s240 + $0x170] sm:$0xff]
        %v323 = vld [vmem:[%s240 + $0x178] sm:$0xff]
        %v324 = vlaneseq
        %v325 = vand.u32 %v324, 127
        %v326 = vadd.s32 %v325, 128
        %v327 = vadd.s32 %v325, 256
        %s328 = smul.u32 %s25, 384
        %v329 = vstv %s328
        %v330 = vadd.s32 %v329, %v325
        %v331 = vadd.s32 %v329, %v326
        %v332 = vadd.s32 %v329, %v327
        %vm333 = vcmp.lt.s32.totalorder %v330, 400
        %vm334 = vcmp.lt.s32.totalorder %v331, 400
        %vm335 = vcmp.lt.s32.totalorder %v332, 400
        %v336 = vsel %vm333, %v276, 0.0
        %v337 = vsel %vm334, %v277, 0.0
        %v338 = vsel %vm335, %v278, 0.0
        %v339 = vsel %vm333, %v279, 0.0
        %v340 = vsel %vm334, %v280, 0.0
        %v341 = vsel %vm335, %v281, 0.0
        %v342 = vsel %vm333, %v282, 0.0
        %v343 = vsel %vm334, %v283, 0.0
        %v344 = vsel %vm335, %v284, 0.0
        %v345 = vsel %vm333, %v285, 0.0
        %v346 = vsel %vm334, %v286, 0.0
        %v347 = vsel %vm335, %v287, 0.0
        %v348 = vsel %vm333, %v288, 0.0
        %v349 = vsel %vm334, %v289, 0.0
        %v350 = vsel %vm335, %v290, 0.0
        %v351 = vsel %vm333, %v291, 0.0
        %v352 = vsel %vm334, %v292, 0.0
        %v353 = vsel %vm335, %v293, 0.0
        %v354 = vsel %vm333, %v294, 0.0
        %v355 = vsel %vm334, %v295, 0.0
        %v356 = vsel %vm335, %v296, 0.0
        %v357 = vsel %vm333, %v297, 0.0
        %v358 = vsel %vm334, %v298, 0.0
        %v359 = vsel %vm335, %v299, 0.0
        %v360 = vsel %vm333, %v300, 0.0
        %v361 = vsel %vm334, %v301, 0.0
        %v362 = vsel %vm335, %v302, 0.0
        %v363 = vsel %vm333, %v303, 0.0
        %v364 = vsel %vm334, %v304, 0.0
        %v365 = vsel %vm335, %v305, 0.0
        %v366 = vsel %vm333, %v306, 0.0
        %v367 = vsel %vm334, %v307, 0.0
        %v368 = vsel %vm335, %v308, 0.0
        %v369 = vsel %vm333, %v309, 0.0
        %v370 = vsel %vm334, %v310, 0.0
        %v371 = vsel %vm335, %v311, 0.0
        %v372 = vsel %vm333, %v312, 0.0
        %v373 = vsel %vm334, %v313, 0.0
        %v374 = vsel %vm335, %v314, 0.0
        %v375 = vsel %vm333, %v315, 0.0
        %v376 = vsel %vm334, %v316, 0.0
        %v377 = vsel %vm335, %v317, 0.0
        %v378 = vsel %vm333, %v318, 0.0
        %v379 = vsel %vm334, %v319, 0.0
        %v380 = vsel %vm335, %v320, 0.0
        %v381 = vsel %vm333, %v321, 0.0
        %v382 = vsel %vm334, %v322, 0.0
        %v383 = vsel %vm335, %v323, 0.0
        %v384 = vsel %vm333, %v276, -inf
        %v385 = vsel %vm334, %v277, -inf
        %v386 = vsel %vm335, %v278, -inf
        %v387 = vsel %vm333, %v279, -inf
        %v388 = vsel %vm334, %v280, -inf
        %v389 = vsel %vm335, %v281, -inf
        %v390 = vsel %vm333, %v282, -inf
        %v391 = vsel %vm334, %v283, -inf
        %v392 = vsel %vm335, %v284, -inf
        %v393 = vsel %vm333, %v285, -inf
        %v394 = vsel %vm334, %v286, -inf
        %v395 = vsel %vm335, %v287, -inf
        %v396 = vsel %vm333, %v288, -inf
        %v397 = vsel %vm334, %v289, -inf
        %v398 = vsel %vm335, %v290, -inf
        %v399 = vsel %vm333, %v291, -inf
        %v400 = vsel %vm334, %v292, -inf
        %v401 = vsel %vm335, %v293, -inf
        %v402 = vsel %vm333, %v294, -inf
        %v403 = vsel %vm334, %v295, -inf
        %v404 = vsel %vm335, %v296, -inf
        %v405 = vsel %vm333, %v297, -inf
        %v406 = vsel %vm334, %v298, -inf
        %v407 = vsel %vm335, %v299, -inf
        %v408 = vsel %vm333, %v300, -inf
        %v409 = vsel %vm334, %v301, -inf
        %v410 = vsel %vm335, %v302, -inf
        %v411 = vsel %vm333, %v303, -inf
        %v412 = vsel %vm334, %v304, -inf
        %v413 = vsel %vm335, %v305, -inf
        %v414 = vsel %vm333, %v306, -inf
        %v415 = vsel %vm334, %v307, -inf
        %v416 = vsel %vm335, %v308, -inf
        %v417 = vsel %vm333, %v309, -inf
        %v418 = vsel %vm334, %v310, -inf
        %v419 = vsel %vm335, %v311, -inf
        %v420 = vsel %vm333, %v312, -inf
        %v421 = vsel %vm334, %v313, -inf
        %v422 = vsel %vm335, %v314, -inf
        %v423 = vsel %vm333, %v315, -inf
        %v424 = vsel %vm334, %v316, -inf
        %v425 = vsel %vm335, %v317, -inf
        %v426 = vsel %vm333, %v318, -inf
        %v427 = vsel %vm334, %v319, -inf
        %v428 = vsel %vm335, %v320, -inf
        %v429 = vsel %vm333, %v321, -inf
        %v430 = vsel %vm334, %v322, -inf
        %v431 = vsel %vm335, %v323, -inf
        %v432 = vld [vmem:[#allocation2] sm:$0x3]
        %v433 = vadd.f32 %v336, %v337
        %v434 = vadd.f32 %v433, %v338
        %435 = vadd.xlane.f32.xlu0 %v434
        %v436 = vpop.xlane.xlu0 %435
        %v437 = vadd.f32 %v339, %v340
        %v438 = vadd.f32 %v437, %v341
        %439 = vadd.xlane.f32.xlu0 %v438
        %v440 = vpop.xlane.xlu0 %439
        %v441 = vadd.f32 %v342, %v343
        %v442 = vadd.f32 %v441, %v344
        %443 = vadd.xlane.f32.xlu0 %v442
        %v444 = vpop.xlane.xlu0 %443
        %v445 = vadd.f32 %v345, %v346
        %v446 = vadd.f32 %v445, %v347
        %447 = vadd.xlane.f32.xlu0 %v446
        %v448 = vpop.xlane.xlu0 %447
        %v449 = vadd.f32 %v348, %v349
        %v450 = vadd.f32 %v449, %v350
        %451 = vadd.xlane.f32.xlu0 %v450
        %v452 = vpop.xlane.xlu0 %451
        %v453 = vadd.f32 %v351, %v352
        %v454 = vadd.f32 %v453, %v353
        %455 = vadd.xlane.f32.xlu0 %v454
        %v456 = vpop.xlane.xlu0 %455
        %v457 = vadd.f32 %v354, %v355
        %v458 = vadd.f32 %v457, %v356
        %459 = vadd.xlane.f32.xlu0 %v458
        %v460 = vpop.xlane.xlu0 %459
        %v461 = vadd.f32 %v357, %v358
        %v462 = vadd.f32 %v461, %v359
        %463 = vadd.xlane.f32.xlu0 %v462
        %v464 = vpop.xlane.xlu0 %463
        %v465 = vadd.f32 %v360, %v361
        %v466 = vadd.f32 %v465, %v362
        %467 = vadd.xlane.f32.xlu0 %v466
        %v468 = vpop.xlane.xlu0 %467
        %v469 = vadd.f32 %v363, %v364
        %v470 = vadd.f32 %v469, %v365
        %471 = vadd.xlane.f32.xlu0 %v470
        %v472 = vpop.xlane.xlu0 %471
        %v473 = vadd.f32 %v366, %v367
        %v474 = vadd.f32 %v473, %v368
        %475 = vadd.xlane.f32.xlu0 %v474
        %v476 = vpop.xlane.xlu0 %475
        %v477 = vadd.f32 %v369, %v370
        %v478 = vadd.f32 %v477, %v371
        %479 = vadd.xlane.f32.xlu0 %v478
        %v480 = vpop.xlane.xlu0 %479
        %v481 = vadd.f32 %v372, %v373
        %v482 = vadd.f32 %v481, %v374
        %483 = vadd.xlane.f32.xlu0 %v482
        %v484 = vpop.xlane.xlu0 %483
        %v485 = vadd.f32 %v375, %v376
        %v486 = vadd.f32 %v485, %v377
        %487 = vadd.xlane.f32.xlu0 %v486
        %v488 = vpop.xlane.xlu0 %487
        %v489 = vadd.f32 %v378, %v379
        %v490 = vadd.f32 %v489, %v380
        %491 = vadd.xlane.f32.xlu0 %v490
        %v492 = vpop.xlane.xlu0 %491
        %v493 = vadd.f32 %v381, %v382
        %v494 = vadd.f32 %v493, %v383
        %495 = vadd.xlane.f32.xlu0 %v494
        %v496 = vpop.xlane.xlu0 %495
        %v513 = vperm.slane %v436, %v325
        %v514 = vadd.s32 %v325, 4294967288
        %v515 = vperm.slane %v440, %v514
        %vm516 = vcmask 130112
        %v517 = vsel %vm516, %v515, %v513
        %v518 = vadd.s32 %v325, 4294967280
        %v519 = vperm.slane %v444, %v518
        %vm520 = vcmask 195712
        %v521 = vsel %vm520, %v519, %v517
        %v522 = vadd.s32 %v325, 4294967272
        %v523 = vperm.slane %v448, %v522
        %vm524 = vcmask 261312
        %v525 = vsel %vm524, %v523, %v521
        %v526 = vadd.s32 %v325, 4294967264
        %v527 = vperm.slane %v452, %v526
        %vm528 = vcmask 326912
        %v529 = vsel %vm528, %v527, %v525
        %v530 = vadd.s32 %v325, 4294967256
        %v531 = vperm.slane %v456, %v530
        %vm532 = vcmask 392512
        %v533 = vsel %vm532, %v531, %v529
        %v534 = vadd.s32 %v325, 4294967248
        %v535 = vperm.slane %v460, %v534
        %vm536 = vcmask 458112
        %v537 = vsel %vm536, %v535, %v533
        %v538 = vadd.s32 %v325, 4294967240
        %v539 = vperm.slane %v464, %v538
        %vm540 = vcmask 523712
        %v541 = vsel %vm540, %v539, %v537
        %v542 = vperm.slane %v468, %v325
        %v543 = vperm.slane %v472, %v514
        %v544 = vsel %vm516, %v543, %v542
        %v545 = vperm.slane %v476, %v518
        %v546 = vsel %vm520, %v545, %v544
        %v547 = vperm.slane %v480, %v522
        %v548 = vsel %vm524, %v547, %v546
        %v549 = vperm.slane %v484, %v526
        %v550 = vsel %vm528, %v549, %v548
        %v551 = vperm.slane %v488, %v530
        %v552 = vsel %vm532, %v551, %v550
        %v553 = vperm.slane %v492, %v534
        %v554 = vsel %vm536, %v553, %v552
        %v555 = vperm.slane %v496, %v538
        %v556 = vsel %vm540, %v555, %v554
        %vm557 = vcmask 1041409
        %v558 = vsel %vm557, %v556, %v541
        %v560 = vadd.f32 %v432, %v558
        %vm561 = vcmask 517120
        %562 = vst.msk [vmem:[#allocation2] sm:$0x3] %vm561, %v560
        %v563 = vld [vmem:[#allocation3] sm:$0x3]
        %v564 = vmax.f32 %v384, %v385
        %v565 = vmax.f32 %v564, %v386
        %566 = vmax.xlane.f32.xlu0 %v565
        %v567 = vpop.xlane.xlu0 %566
        %v568 = vmax.f32 %v387, %v388
        %v569 = vmax.f32 %v568, %v389
        %570 = vmax.xlane.f32.xlu0 %v569
        %v571 = vpop.xlane.xlu0 %570
        %v572 = vmax.f32 %v390, %v391
        %v573 = vmax.f32 %v572, %v392
        %574 = vmax.xlane.f32.xlu0 %v573
        %v575 = vpop.xlane.xlu0 %574
        %v576 = vmax.f32 %v393, %v394
        %v577 = vmax.f32 %v576, %v395
        %578 = vmax.xlane.f32.xlu0 %v577
        %v579 = vpop.xlane.xlu0 %578
        %v580 = vmax.f32 %v396, %v397
        %v581 = vmax.f32 %v580, %v398
        %582 = vmax.xlane.f32.xlu0 %v581
        %v583 = vpop.xlane.xlu0 %582
        %v584 = vmax.f32 %v399, %v400
        %v585 = vmax.f32 %v584, %v401
        %586 = vmax.xlane.f32.xlu0 %v585
        %v587 = vpop.xlane.xlu0 %586
        %v588 = vmax.f32 %v402, %v403
        %v589 = vmax.f32 %v588, %v404
        %590 = vmax.xlane.f32.xlu0 %v589
        %v591 = vpop.xlane.xlu0 %590
        %v592 = vmax.f32 %v405, %v406
        %v593 = vmax.f32 %v592, %v407
        %594 = vmax.xlane.f32.xlu0 %v593
        %v595 = vpop.xlane.xlu0 %594
        %v596 = vmax.f32 %v408, %v409
        %v597 = vmax.f32 %v596, %v410
        %598 = vmax.xlane.f32.xlu0 %v597
        %v599 = vpop.xlane.xlu0 %598
        %v600 = vmax.f32 %v411, %v412
        %v601 = vmax.f32 %v600, %v413
        %602 = vmax.xlane.f32.xlu0 %v601
        %v603 = vpop.xlane.xlu0 %602
        %v604 = vmax.f32 %v414, %v415
        %v605 = vmax.f32 %v604, %v416
        %606 = vmax.xlane.f32.xlu0 %v605
        %v607 = vpop.xlane.xlu0 %606
        %v608 = vmax.f32 %v417, %v418
        %v609 = vmax.f32 %v608, %v419
        %610 = vmax.xlane.f32.xlu0 %v609
        %v611 = vpop.xlane.xlu0 %610
        %v612 = vmax.f32 %v420, %v421
        %v613 = vmax.f32 %v612, %v422
        %614 = vmax.xlane.f32.xlu0 %v613
        %v615 = vpop.xlane.xlu0 %614
        %v616 = vmax.f32 %v423, %v424
        %v617 = vmax.f32 %v616, %v425
        %618 = vmax.xlane.f32.xlu0 %v617
        %v619 = vpop.xlane.xlu0 %618
        %v620 = vmax.f32 %v426, %v427
        %v621 = vmax.f32 %v620, %v428
        %622 = vmax.xlane.f32.xlu0 %v621
        %v623 = vpop.xlane.xlu0 %622
        %v624 = vmax.f32 %v429, %v430
        %v625 = vmax.f32 %v624, %v431
        %626 = vmax.xlane.f32.xlu0 %v625
        %v627 = vpop.xlane.xlu0 %626
        %v644 = vperm.slane %v567, %v325
        %v645 = vperm.slane %v571, %v514
        %v646 = vsel %vm516, %v645, %v644
        %v647 = vperm.slane %v575, %v518
        %v648 = vsel %vm520, %v647, %v646
        %v649 = vperm.slane %v579, %v522
        %v650 = vsel %vm524, %v649, %v648
        %v651 = vperm.slane %v583, %v526
        %v652 = vsel %vm528, %v651, %v650
        %v653 = vperm.slane %v587, %v530
        %v654 = vsel %vm532, %v653, %v652
        %v655 = vperm.slane %v591, %v534
        %v656 = vsel %vm536, %v655, %v654
        %v657 = vperm.slane %v595, %v538
        %v658 = vsel %vm540, %v657, %v656
        %v659 = vperm.slane %v599, %v325
        %v660 = vperm.slane %v603, %v514
        %v661 = vsel %vm516, %v660, %v659
        %v662 = vperm.slane %v607, %v518
        %v663 = vsel %vm520, %v662, %v661
        %v664 = vperm.slane %v611, %v522
        %v665 = vsel %vm524, %v664, %v663
        %v666 = vperm.slane %v615, %v526
        %v667 = vsel %vm528, %v666, %v665
        %v668 = vperm.slane %v619, %v530
        %v669 = vsel %vm532, %v668, %v667
        %v670 = vperm.slane %v623, %v534
        %v671 = vsel %vm536, %v670, %v669
        %v672 = vperm.slane %v627, %v538
        %v673 = vsel %vm540, %v672, %v671
        %v674 = vsel %vm557, %v673, %v658
        %v676 = vmax.f32 %v563, %v674
        %677 = vst.msk [vmem:[#allocation3] sm:$0x3] %vm561, %v676
        %p678 = scmp.eq.s32.totalorder %s25, 1
        // Predicated region
        $region49: #{tpu_custom_call.1} parent=39 // pred_check
          %p679 = pneg %p678
        $region50: #{tpu_custom_call.1} parent=39 // pred_check_branch
          %681 = sbr.rel (%p679) target = $region52
        $region51: #{tpu_custom_call.1} parent=39 // pred_region
          %v682 = vld [vmem:[#allocation2] sm:$0x3]
          %v683 = vmul.f32 %v682, 0.0025
          %v684 = vld [vmem:[#allocation3] sm:$0x3]
          %v686 = vrot.slane %v684, 6
          %vm688 = vcmask 1041408
          %v689 = vsel %vm688, %v683, %v686
          %v690 = vld [vmem:[%s1] sm:$0xff]
          %v691 = vld [vmem:[%s1 + $0x8] sm:$0xff]
          %v692 = vld [vmem:[%s1 + $0x10] sm:$0xff]
          %v693 = vld [vmem:[%s1 + $0x18] sm:$0xff]
          %v694 = vld [vmem:[%s1 + $0x20] sm:$0xff]
          %v695 = vld [vmem:[%s1 + $0x28] sm:$0xff]
          %v696 = vld [vmem:[%s1 + $0x30] sm:$0xff]
          %v697 = vld [vmem:[%s1 + $0x38] sm:$0xff]
          %v698 = vld [vmem:[%s2] sm:$0x1]
          %v700 = vperm.slane %v698, 0
          %vm702 = vcmask 523264
          %v704 = vsel %vm702, %v689, 0
          %706 = vmatpush.msra.mxu0 0.0
          %707 = vmatpush.msra.mxu0 0.0
          %708 = vmatpush.msra.mxu0 0.0
          %709 = vmatpush.msra.mxu0 0.0
          %710 = vmatpush.msra.mxu0 0.0
          %711 = vmatpush.msra.mxu0 0.0
          %712 = vmatpush.msra.mxu0 0.0
          %713 = vmatpush.msra.mxu0 0.0
          %714 = vmatpush.msra.mxu0 %v697
          %715 = vmatpush.msra.mxu0 %v696
          %716 = vmatpush.msra.mxu0 %v695
          %717 = vmatpush.msra.mxu0 %v694
          %718 = vmatpush.msra.mxu0 %v693
          %719 = vmatpush.msra.mxu0 %v692
          %720 = vmatpush.msra.mxu0 %v691
          %721 = vmatpush.msra.mxu0 %v690
          %722 = vmatmul.f32.gmra.mxu0 %v704
          %v723 = vpop.f32.mrf.mxu0
          %v724 = vadd.f32 %v700, %v723
          %725 = vdwg.mxu0
          %v726 = vmax.f32 %v724, 0.0
          %v727 = vld [vmem:[%s3] sm:$0xf]
          %v728 = vld [vmem:[%s4] sm:$0x1]
          %v730 = vperm.slane %v728, 0
          %vm732 = vcmask 31744
          %v734 = vsel %vm732, %v726, 0
          %vm736 = vcmask 1043456
          %v738 = vsel %vm736, %v727, 0
          %740 = vmatpush.msra.mxu0 0.0
          %741 = vmatpush.msra.mxu0 0.0
          %742 = vmatpush.msra.mxu0 0.0
          %743 = vmatpush.msra.mxu0 0.0
          %744 = vmatpush.msra.mxu0 0.0
          %745 = vmatpush.msra.mxu0 0.0
          %746 = vmatpush.msra.mxu0 0.0
          %747 = vmatpush.msra.mxu0 0.0
          %748 = vmatpush.msra.mxu0 0.0
          %749 = vmatpush.msra.mxu0 0.0
          %750 = vmatpush.msra.mxu0 0.0
          %751 = vmatpush.msra.mxu0 0.0
          %752 = vmatpush.msra.mxu0 0.0
          %753 = vmatpush.msra.mxu0 0.0
          %754 = vmatpush.msra.mxu0 0.0
          %755 = vmatpush.msra.mxu0 %v738
          %756 = vmatmul.f32.gmra.mxu0 %v734
          %v757 = vpop.f32.mrf.mxu0
          %v758 = vadd.f32 %v730, %v757
          %759 = vdwg.mxu0
          %v761 = vrot.slane %v758, 2
          %v763 = vadd.f32 %v758, %v761
          %v764 = vxor.u32 %v763, 2147483648
          %v765 = vmul.f32 %v764, 1.442695
          %v766 = vpow.pop %v765
          %v767 = vadd.f32 %v766, 1.0
          %v768 = vrcp.pop %v767
          %v769 = vmul.f32 %v767, %v768
          %v770 = vsub.f32 1.0, %v769
          %v771 = vmul.f32 %v768, %v770
          %v772 = vadd.f32 %v768, %v771
          %vm773 = vweird.f32 %v767
          %vm774 = vweird.f32 %v768
          %vm775 = vmor %vm773, %vm774
          %v776 = vsel %vm775, %v768, %v772
          %v777 = vand.u32 2147483647, %v767
          %vm778 = vcmp.eq.f32.partialorder %v777, 8.507059e+37
          %v779 = vand.u32 %v767, 2147483648
          %v780 = vor.u32 1.1754944e-38, %v779
          %v781 = vsel %vm778, %v780, %v776
          %v782 = vmul.f32 1.0, %v781
          %783 = vst.msk [vmem:[#allocation7] sm:$0x3] %vm561, %v782
        $region52: #{tpu_custom_call.1} parent=39 // pred_fallthru
          _
        // Predicated region
        $region53: #{tpu_custom_call.1} parent=39 // pred_check
          %p784 = pneg %p162
        $region54: #{tpu_custom_call.1} parent=39 // pred_check_branch
          %786 = sbr.rel (%p784) target = $region56
        $region55: #{tpu_custom_call.1} parent=39 // pred_region
          %788 = vsyncadd [#allocation6], 0
          %s789 = smul.addr %s24, 2
          %s790 = scalar_lea.hbm %s5, %s789
          %s792 = sshll.u32 [#allocation7], 4
          %s793 = int_to_ptr.vmem [resolvable:$true] %s792
          %s794 = sshll.u32 %s790, 4
          %s795 = int_to_ptr.hbm [resolvable:$true] %s794
          %797 = dma.vmem_to_hbm [thread:$0]  %s793, 32, %s795, [#allocation6]
        $region56: #{tpu_custom_call.1} parent=39 // pred_fallthru
          _
        // Predicated region
        $region57: #{tpu_custom_call.1} parent=39 // pred_check
          %p798 = pneg %p162
        $region58: #{tpu_custom_call.1} parent=39 // pred_check_branch
          %800 = sbr.rel (%p798) target = $region60
        $region59: #{tpu_custom_call.1} parent=39 // pred_region
          %802 = dma.done [#allocation6], 32
        $region60: #{tpu_custom_call.1} parent=39 // pred_fallthru
          _
      $region40: #{tpu_custom_call.1} parent=5 // pred_fallthru
        _
      %p803 = scmp.le.s32.totalorder 2, %s15
      // Predicated region
      $region61: #{tpu_custom_call.1} parent=5 // pred_check
        %p804 = pneg %p803
      $region62: #{tpu_custom_call.1} parent=5 // pred_check_branch
        %806 = sbr.rel (%p804) target = $region64
      $region63: #{tpu_custom_call.1} parent=5 // pred_region
        %s807 = ssub.s32 %s15, 2
      $region64: #{tpu_custom_call.1} parent=5 // pred_fallthru
        _
    $region6: #{tpu_custom_call.1} parent=1 // loop_footer
      %s19 = sadd.s32 1, %s15
    $region7: #{tpu_custom_call.1} parent=1 // loop_footer_branch
      %14 = sbr.rel target = $region3
    $region8: #{tpu_custom_call.1} parent=1 // loop_exit
      _
    %808 = vsyncpa [#allocation5], 1
    %s809 = scalar_lea.sflag [#allocation5], 1
    %810 = vsyncpa %s809, 1
    %811 = vsyncpa [#allocation6], 1
    %s812 = scalar_lea.sflag [#allocation6], 1
    %813 = vsyncpa %s812, 1

</llo_original>
